<compile_context>
chip_gen: v5e
topology: v5e:2x2
jax: 0.10.0
libtpu: 0.0.40
codegen_flags: <defaults>
</compile_context>

<pallas_src>
import math

import jax
import jax.numpy as jnp
import numpy as np
from jax.experimental import pallas as pl
from jax.experimental.pallas import tpu as pltpu


def _rup(x, m):
    return ((x + m - 1) // m) * m


# ---------------------------------------------------------------------------
# Kernel factory (static sizes / constant-buffer offsets captured by closure).
# ---------------------------------------------------------------------------
def _make_kernel(B, S, E, H, GP, VP, SW, c_offs):
    o_ba, o_v, o_bf1, o_gam, o_bet, o_bf2, o_bl = c_offs
    f32 = jnp.float32
    bf16 = jnp.bfloat16

    def kernel(xhe_ref, c0_ref, enc2d_ref, enc3d_ref,
               wah_ref, wae_ref, wall_ref, wf1_ref, wf2_ref, cst_ref,
               pred_ref, state_ref):
        xhe = xhe_ref[...]                         # (B, H+E) f32 = [h0 | emb]
        h0 = xhe[:, :H]                            # lane-offset 0 -> free view
        c0 = c0_ref[...]                           # (B, H) f32
        enc3 = enc3d_ref[...]                      # (B, S, 2H) f32

        # packed small constants (each slot starts at a multiple of 128 lanes)
        ba = cst_ref[:, o_ba:o_ba + H]             # (1, H)
        vv = cst_ref[:, o_v:o_v + H]               # (1, H)
        bf1 = cst_ref[:, o_bf1:o_bf1 + H]          # (1, H)
        gam = cst_ref[:, o_gam:o_gam + 3 * H]      # (1, 3H)
        bet = cst_ref[:, o_bet:o_bet + 3 * H]      # (1, 3H)
        bf2 = cst_ref[:, o_bf2:o_bf2 + VP]         # (1, VP)
        bl = cst_ref[:, o_bl:o_bl + 4 * GP]        # (1, 4*GP)

        # ---- additive (Bahdanau) attention --------------------------------
        # energy matmul on the pre-flattened (B*S, 2H) bf16 view (MXU).
        e_enc = jnp.dot(enc2d_ref[...], wae_ref[...],
                        preferred_element_type=f32)            # (B*S, H)
        e_hid = jnp.dot(h0.astype(bf16), wah_ref[...],
                        preferred_element_type=f32) + ba       # (B, H)
        # (B*S, H) -> (B, S, H): S is a multiple of 8 so the split is
        # sublane-tile aligned (no data movement).
        energy = jnp.tanh(e_enc.reshape(B, S, H) + e_hid[:, None, :])
        scores = jnp.sum(energy * vv, axis=-1)                 # (B, S)  (XLU)
        m = jnp.max(scores, axis=-1, keepdims=True)
        ex = jnp.exp(scores - m)
        attn = ex * pl.reciprocal(jnp.sum(ex, axis=-1, keepdims=True),
                                  approx=True)                 # (B, S)
        context = jnp.sum(attn[:, :, None] * enc3, axis=1)     # (B, 2H) f32

        # ---- single LSTM step, all gates in ONE fused matmul --------------
        # x_all = [h0 | emb | context]; each gate padded to GP output lanes so
        # the per-gate slices below start at 128-lane (vreg) boundaries.
        x_all = jnp.concatenate([xhe, context], axis=-1)       # (B, H+E+2H)
        gates = jnp.dot(x_all.astype(bf16), wall_ref[...],
                        preferred_element_type=f32) + bl       # (B, 4*GP)
        i_g = jax.nn.sigmoid(gates[:, 0 * GP:0 * GP + H])
        f_g = jax.nn.sigmoid(gates[:, 1 * GP:1 * GP + H])
        g_g = jnp.tanh(gates[:, 2 * GP:2 * GP + H])
        o_g = jax.nn.sigmoid(gates[:, 3 * GP:3 * GP + H])
        c_new = f_g * c0 + i_g * g_g
        h_new = o_g * jnp.tanh(c_new)

        # ---- LayerNorm over concat(output, context) ------------------------
        hc = jnp.concatenate([h_new, context], axis=-1)        # (B, 3H) f32
        mu = jnp.mean(hc, axis=-1, keepdims=True)
        var = jnp.mean((hc - mu) ** 2, axis=-1, keepdims=True)
        hc_n = (hc - mu) * jax.lax.rsqrt(var + 1e-5) * gam + bet

        # ---- fc_out: Linear(3H,H) -> ReLU -> Linear(H, VP) -----------------
        hid_fc = jnp.maximum(
            jnp.dot(hc_n.astype(bf16), wf1_ref[...],
                    preferred_element_type=f32) + bf1, 0.0)    # (B, H)
        pred_ref[...] = (jnp.dot(hid_fc.astype(bf16), wf2_ref[...],
                                 preferred_element_type=f32) + bf2)  # (B, VP)

        # ---- pack (h, c, attn) into one lane-dense (B, SW) output ----------
        pieces = [h_new, c_new, attn]
        pad = SW - (2 * H + S)
        if pad > 0:
            pieces.append(jnp.zeros((B, pad), f32))
        state_ref[...] = jnp.concatenate(pieces, axis=-1)

    return kernel


def _pack_consts(pieces):
    """Pack 1-D f32 vectors into one (1, CW) buffer; each at a 128-lane slot."""
    offs, cur = [], 0
    for p in pieces:
        offs.append(cur)
        cur = _rup(cur + int(p.shape[0]), 128)
    buf = jnp.zeros((1, cur), jnp.float32)
    for p, o in zip(pieces, offs):
        buf = buf.at[0, o:o + p.shape[0]].set(p.astype(jnp.float32))
    return buf, tuple(offs)


# ---------------------------------------------------------------------------
# Wrapper (eval-mode equivalent of Decoder.forward)
# ---------------------------------------------------------------------------
def decoder_forward(torch_params, input_ids, hidden, cell, encoder_outputs):
    tp = torch_params
    f32, bf16 = jnp.float32, jnp.bfloat16
    V, E = tp["emb"].shape
    H = tp["W_hh"].shape[1]
    B, S, H2 = encoder_outputs.shape
    assert H2 == 2 * H and S % 8 == 0

    GP = _rup(H, 128)            # per-gate lane stride (gate slices vreg-aligned)
    VP = _rup(V, 128)            # lane-dense prediction width
    SW = _rup(2 * H + S, 128)    # packed (h | c | attn) state width

    # glue: embedding gather (padding_idx row already zero); dropout == id.
    embedded = jnp.take(tp["emb"], input_ids, axis=0).astype(f32)   # (B, E)
    h0 = hidden[-1].astype(f32)                                     # (B, H)
    c0 = cell[-1].astype(f32)                                       # (B, H)
    xhe = jnp.concatenate([h0, embedded], axis=-1)                  # (B, H+E)

    # encoder outputs: flat bf16 view (energy matmul) + 3-D f32 view (context)
    enc3d = encoder_outputs.astype(f32)
    enc2d = enc3d.reshape(B * S, 2 * H).astype(bf16)

    # attention weights (pre-transposed, split over [hidden | enc])
    wah = tp["W_attn"][:, :H].T.astype(bf16)                        # (H, H)
    wae = tp["W_attn"][:, H:].T.astype(bf16)                        # (2H, H)

    # fused LSTM weight for x_all = [h0 | emb | context], gate-padded to GP
    w_cat = jnp.concatenate([tp["W_hh"].T,                          # (H, 4H)
                             tp["W_ih"][:, :E].T,                   # (E, 4H)
                             tp["W_ih"][:, E:].T], axis=0)          # (2H, 4H)
    wall = jnp.zeros((H + E + 2 * H, 4 * GP), f32)
    bl = tp["b_ih"] + tp["b_hh"]
    bl4 = jnp.zeros((4 * GP,), f32)
    for g in range(4):
        wall = wall.at[:, g * GP:g * GP + H].set(w_cat[:, g * H:(g + 1) * H])
        bl4 = bl4.at[g * GP:g * GP + H].set(bl[g * H:(g + 1) * H])
    wall = wall.astype(bf16)

    # fc_out weights (fc2 zero-padded to VP lanes for a dense output write)
    wf1 = tp["W_fc1"].T.astype(bf16)                                # (3H, H)
    wf2 = jnp.zeros((H, VP), f32).at[:, :V].set(tp["W_fc2"].T).astype(bf16)
    bf2 = jnp.zeros((VP,), f32).at[:V].set(tp["b_fc2"])

    consts, offs = _pack_consts(
        [tp["b_attn"], tp["v"], tp["b_fc1"], tp["gamma"], tp["beta"], bf2, bl4])

    kernel = _make_kernel(B, S, E, H, GP, VP, SW, offs)
    vmem = pl.BlockSpec(memory_space=pltpu.MemorySpace.VMEM)

    pred_pad, state = pl.pallas_call(
        kernel,
        out_shape=(jax.ShapeDtypeStruct((B, VP), f32),
                   jax.ShapeDtypeStruct((B, SW), f32)),
        in_specs=[vmem] * 10,
        out_specs=(vmem, vmem),
        compiler_params=pltpu.CompilerParams(vmem_limit_bytes=32 * 1024 * 1024),
    )(xhe, c0, enc2d, enc3d, wah, wae, wall, wf1, wf2, consts)

    pred = pred_pad[:, :V]
    h_new = state[:, :H]
    c_new = state[:, H:2 * H]
    attn = state[:, 2 * H:2 * H + S]
    # match PyTorch shapes: hidden/cell are (n_layers=1, B, H)
    return pred, h_new[None], c_new[None], attn


# ---------------------------------------------------------------------------
# Pure-JAX f32 reference (mirrors the PyTorch code) for correctness check.
# ---------------------------------------------------------------------------
def reference_forward(tp, input_ids, hidden, cell, enc):
    emb = jnp.take(tp["emb"], input_ids, axis=0)
    h_last = hidden[-1]
    H = h_last.shape[-1]
    S = enc.shape[1]
    hid_rep = jnp.repeat(h_last[:, None, :], S, axis=1)
    cat = jnp.concatenate([hid_rep, enc], axis=2)
    energy = jnp.tanh(cat @ tp["W_attn"].T + tp["b_attn"])
    att = jnp.einsum("bsh,h->bs", energy, tp["v"])
    attw = jax.nn.softmax(att, axis=1)
    context = jnp.einsum("bs,bsh->bh", attw, enc)
    x = jnp.concatenate([emb, context], axis=1)
    gates = x @ tp["W_ih"].T + h_last @ tp["W_hh"].T + tp["b_ih"] + tp["b_hh"]
    i = jax.nn.sigmoid(gates[:, :H])
    f = jax.nn.sigmoid(gates[:, H:2 * H])
    g = jnp.tanh(gates[:, 2 * H:3 * H])
    o = jax.nn.sigmoid(gates[:, 3 * H:])
    c_new = f * cell[-1] + i * g
    h_new = o * jnp.tanh(c_new)
    pi = jnp.concatenate([h_new, context], axis=1)
    mu = pi.mean(-1, keepdims=True)
    var = ((pi - mu) ** 2).mean(-1, keepdims=True)
    pin = (pi - mu) / jnp.sqrt(var + 1e-5) * tp["gamma"] + tp["beta"]
    hid_fc = jax.nn.relu(pin @ tp["W_fc1"].T + tp["b_fc1"])
    pred = hid_fc @ tp["W_fc2"].T + tp["b_fc2"]
    return pred, h_new[None], c_new[None], attw


# ---------------------------------------------------------------------------
def init_params(key, vocab_size, embed_size, hidden_size):
    V, E, H = vocab_size, embed_size, hidden_size
    ks = jax.random.split(key, 12)
    xb = math.sqrt(6.0 / (V + E))
    emb = jax.random.uniform(ks[0], (V, E), jnp.float32, -xb, xb)
    emb = emb.at[0].set(0.0)                           # padding_idx=0

    kl = 1.0 / math.sqrt(H)
    W_ih = jax.random.uniform(ks[1], (4 * H, E + 2 * H), jnp.float32, -kl, kl)
    W_hh = jax.random.uniform(ks[2], (4 * H, H), jnp.float32, -kl, kl)
    b_ih = jax.random.uniform(ks[3], (4 * H,), jnp.float32, -kl, kl)
    b_hh = jax.random.uniform(ks[4], (4 * H,), jnp.float32, -kl, kl)

    ka = 1.0 / math.sqrt(3 * H)
    W_attn = jax.random.uniform(ks[5], (H, 3 * H), jnp.float32, -ka, ka)
    b_attn = jax.random.uniform(ks[6], (H,), jnp.float32, -ka, ka)
    v = jax.random.uniform(ks[7], (H,), jnp.float32)   # torch.rand

    W_fc1 = jax.random.uniform(ks[8], (H, 3 * H), jnp.float32, -ka, ka)
    b_fc1 = jax.random.uniform(ks[9], (H,), jnp.float32, -ka, ka)
    kf = 1.0 / math.sqrt(H)
    W_fc2 = jax.random.uniform(ks[10], (V, H), jnp.float32, -kf, kf)
    b_fc2 = jax.random.uniform(ks[11], (V,), jnp.float32, -kf, kf)

    return dict(emb=emb, W_ih=W_ih, W_hh=W_hh, b_ih=b_ih, b_hh=b_hh,
                W_attn=W_attn, b_attn=b_attn, v=v,
                W_fc1=W_fc1, b_fc1=b_fc1, W_fc2=W_fc2, b_fc2=b_fc2,
                gamma=jnp.ones((3 * H,), jnp.float32),
                beta=jnp.zeros((3 * H,), jnp.float32))


if __name__ == "__main__":
    V, E, H = 32, 16, 32          # vocab_size, embed_size, hidden_size
    B, S = 2, 8                   # batch, src_len (encoder outputs are 2H wide)

    key = jax.random.PRNGKey(0)
    kp, k1, k2, k3, k4 = jax.random.split(key, 5)
    params = init_params(kp, V, E, H)

    input_ids = jax.random.randint(k1, (B,), 0, V)                 # (B,)
    hidden = jax.random.normal(k2, (1, B, H), jnp.float32)         # (n_layers, B, H)
    cell = jax.random.normal(k3, (1, B, H), jnp.float32)
    encoder_outputs = jax.random.normal(k4, (B, S, 2 * H), jnp.float32)

    pred, h_new, c_new, attn = decoder_forward(
        params, input_ids, hidden, cell, encoder_outputs)
    jax.block_until_ready((pred, h_new, c_new, attn))

    r_pred, r_h, r_c, r_attn = reference_forward(
        params, input_ids, hidden, cell, encoder_outputs)

    # Matmul operands are bf16 (f32 accumulation), so compare at bf16-level
    # tolerances; all non-matmul math is still f32.
    tol = dict(rtol=3e-2, atol=5e-2)
    np.testing.assert_allclose(np.asarray(pred), np.asarray(r_pred), **tol)
    np.testing.assert_allclose(np.asarray(h_new), np.asarray(r_h), **tol)
    np.testing.assert_allclose(np.asarray(c_new), np.asarray(r_c), **tol)
    np.testing.assert_allclose(np.asarray(attn), np.asarray(r_attn), **tol)

    print("KERNEL_OK")
</pallas_src>

<mosaic_0001>
module attributes {stable_mosaic.version = 11 : i64} {
  func.func @kernel(%arg0: memref<2x48xf32, #tpu.memory_space<vmem>>, %arg1: memref<2x32xf32, #tpu.memory_space<vmem>>, %arg2: memref<16x64xbf16, #tpu.memory_space<vmem>>, %arg3: memref<2x8x64xf32, #tpu.memory_space<vmem>>, %arg4: memref<32x32xbf16, #tpu.memory_space<vmem>>, %arg5: memref<64x32xbf16, #tpu.memory_space<vmem>>, %arg6: memref<112x512xbf16, #tpu.memory_space<vmem>>, %arg7: memref<96x32xbf16, #tpu.memory_space<vmem>>, %arg8: memref<32x128xbf16, #tpu.memory_space<vmem>>, %arg9: memref<1x1280xf32, #tpu.memory_space<vmem>>, %arg10: memref<2x128xf32, #tpu.memory_space<vmem>>, %arg11: memref<2x128xf32, #tpu.memory_space<vmem>>) attributes {dimension_semantics = [], scalar_prefetch = 0 : i64, scratch_operands = 0 : i64, tpu.core_type = #tpu.core_type<tc>} {
    %c0 = arith.constant 0 : index
    %c0_0 = arith.constant 0 : index
    %0 = vector.load %arg0[%c0, %c0_0] : memref<2x48xf32, #tpu.memory_space<vmem>>, vector<2x48xf32>
    %1 = vector.extract_strided_slice %0 {offsets = [0, 0], sizes = [2, 32], strides = [1, 1]} : vector<2x48xf32> to vector<2x32xf32>
    %c0_1 = arith.constant 0 : index
    %c0_2 = arith.constant 0 : index
    %2 = vector.load %arg1[%c0_1, %c0_2] : memref<2x32xf32, #tpu.memory_space<vmem>>, vector<2x32xf32>
    %c0_3 = arith.constant 0 : index
    %c0_4 = arith.constant 0 : index
    %c0_5 = arith.constant 0 : index
    %3 = vector.load %arg3[%c0_3, %c0_4, %c0_5] : memref<2x8x64xf32, #tpu.memory_space<vmem>>, vector<2x8x64xf32>
    %c0_6 = arith.constant 0 : index
    %c0_7 = arith.constant 0 : index
    %4 = vector.load %arg9[%c0_6, %c0_7] : memref<1x1280xf32, #tpu.memory_space<vmem>>, vector<1x32xf32>
    %c0_8 = arith.constant 0 : index
    %c128 = arith.constant 128 : index
    %5 = vector.load %arg9[%c0_8, %c128] : memref<1x1280xf32, #tpu.memory_space<vmem>>, vector<1x32xf32>
    %c0_9 = arith.constant 0 : index
    %c256 = arith.constant 256 : index
    %6 = vector.load %arg9[%c0_9, %c256] : memref<1x1280xf32, #tpu.memory_space<vmem>>, vector<1x32xf32>
    %c0_10 = arith.constant 0 : index
    %c384 = arith.constant 384 : index
    %7 = vector.load %arg9[%c0_10, %c384] : memref<1x1280xf32, #tpu.memory_space<vmem>>, vector<1x96xf32>
    %c0_11 = arith.constant 0 : index
    %c512 = arith.constant 512 : index
    %8 = vector.load %arg9[%c0_11, %c512] : memref<1x1280xf32, #tpu.memory_space<vmem>>, vector<1x96xf32>
    %c0_12 = arith.constant 0 : index
    %c640 = arith.constant 640 : index
    %9 = vector.load %arg9[%c0_12, %c640] : memref<1x1280xf32, #tpu.memory_space<vmem>>, vector<1x128xf32>
    %c0_13 = arith.constant 0 : index
    %c768 = arith.constant 768 : index
    %10 = vector.load %arg9[%c0_13, %c768] : memref<1x1280xf32, #tpu.memory_space<vmem>>, vector<1x512xf32>
    %c0_14 = arith.constant 0 : index
    %c0_15 = arith.constant 0 : index
    %11 = vector.load %arg2[%c0_14, %c0_15] : memref<16x64xbf16, #tpu.memory_space<vmem>>, vector<16x64xbf16>
    %c0_16 = arith.constant 0 : index
    %c0_17 = arith.constant 0 : index
    %12 = vector.load %arg5[%c0_16, %c0_17] : memref<64x32xbf16, #tpu.memory_space<vmem>>, vector<64x32xbf16>
    %cst = arith.constant dense<0.000000e+00> : vector<16x32xf32>
    %13 = tpu.matmul %11, %12, %cst {dimension_numbers = #tpu.dot_dimension_numbers<[1], [0], [0], [1], [0, 0, 1, 1], [], []>} : vector<16x64xbf16>, vector<64x32xbf16>, vector<16x32xf32> -> vector<16x32xf32>
    %14 = arith.truncf %1 : vector<2x32xf32> to vector<2x32xbf16>
    %c0_18 = arith.constant 0 : index
    %c0_19 = arith.constant 0 : index
    %15 = vector.load %arg4[%c0_18, %c0_19] : memref<32x32xbf16, #tpu.memory_space<vmem>>, vector<32x32xbf16>
    %cst_20 = arith.constant dense<0.000000e+00> : vector<2x32xf32>
    %16 = tpu.matmul %14, %15, %cst_20 {dimension_numbers = #tpu.dot_dimension_numbers<[1], [0], [0], [1], [0, 0, 1, 1], [], []>} : vector<2x32xbf16>, vector<32x32xbf16>, vector<2x32xf32> -> vector<2x32xf32>
    %17 = vector.broadcast %4 : vector<1x32xf32> to vector<2x32xf32>
    %18 = arith.addf %16, %17 : vector<2x32xf32>
    %19 = vector.shape_cast %13 : vector<16x32xf32> to vector<2x8x32xf32>
    %20 = vector.shape_cast %18 : vector<2x32xf32> to vector<2x1x32xf32>
    %21 = vector.broadcast %20 : vector<2x1x32xf32> to vector<2x8x32xf32>
    %22 = arith.addf %19, %21 : vector<2x8x32xf32>
    %23 = math.tanh %22 : vector<2x8x32xf32>
    %24 = vector.shape_cast %5 : vector<1x32xf32> to vector<1x1x32xf32>
    %25 = vector.broadcast %24 : vector<1x1x32xf32> to vector<2x8x32xf32>
    %26 = arith.mulf %23, %25 : vector<2x8x32xf32>
    %cst_21 = arith.constant dense<0.000000e+00> : vector<2x8xf32>
    %27 = vector.multi_reduction <add>, %26, %cst_21 [2] : vector<2x8x32xf32> to vector<2x8xf32>
    %cst_22 = arith.constant dense<0xFF800000> : vector<2xf32>
    %28 = vector.multi_reduction <maximumf>, %27, %cst_22 [1] : vector<2x8xf32> to vector<2xf32>
    %29 = vector.shape_cast %28 : vector<2xf32> to vector<2x1xf32>
    %30 = vector.broadcast %29 : vector<2x1xf32> to vector<2x8xf32>
    %31 = arith.subf %27, %30 : vector<2x8xf32>
    %32 = math.exp %31 : vector<2x8xf32>
    %cst_23 = arith.constant dense<0.000000e+00> : vector<2xf32>
    %33 = vector.multi_reduction <add>, %32, %cst_23 [1] : vector<2x8xf32> to vector<2xf32>
    %34 = vector.shape_cast %33 : vector<2xf32> to vector<2x1xf32>
    %35 = tpu.reciprocal %34 {approx = true} : vector<2x1xf32> -> vector<2x1xf32>
    %36 = vector.broadcast %35 : vector<2x1xf32> to vector<2x8xf32>
    %37 = arith.mulf %32, %36 : vector<2x8xf32>
    %38 = vector.shape_cast %37 : vector<2x8xf32> to vector<2x8x1xf32>
    %39 = vector.broadcast %38 : vector<2x8x1xf32> to vector<2x8x64xf32>
    %40 = arith.mulf %39, %3 : vector<2x8x64xf32>
    %cst_24 = arith.constant dense<0.000000e+00> : vector<2x64xf32>
    %41 = vector.multi_reduction <add>, %40, %cst_24 [1] : vector<2x8x64xf32> to vector<2x64xf32>
    %42 = tpu.concatenate %0, %41 in 1 : vector<2x48xf32>, vector<2x64xf32> -> vector<2x112xf32>
    %43 = arith.truncf %42 : vector<2x112xf32> to vector<2x112xbf16>
    %c0_25 = arith.constant 0 : index
    %c0_26 = arith.constant 0 : index
    %44 = vector.load %arg6[%c0_25, %c0_26] : memref<112x512xbf16, #tpu.memory_space<vmem>>, vector<112x512xbf16>
    %cst_27 = arith.constant dense<0.000000e+00> : vector<2x512xf32>
    %45 = tpu.matmul %43, %44, %cst_27 {dimension_numbers = #tpu.dot_dimension_numbers<[1], [0], [0], [1], [0, 0, 1, 1], [], []>} : vector<2x112xbf16>, vector<112x512xbf16>, vector<2x512xf32> -> vector<2x512xf32>
    %46 = vector.broadcast %10 : vector<1x512xf32> to vector<2x512xf32>
    %47 = arith.addf %45, %46 : vector<2x512xf32>
    %48 = vector.extract_strided_slice %47 {offsets = [0, 0], sizes = [2, 32], strides = [1, 1]} : vector<2x512xf32> to vector<2x32xf32>
    %49 = arith.negf %48 : vector<2x32xf32>
    %50 = math.exp %49 : vector<2x32xf32>
    %cst_28 = arith.constant 1.000000e+00 : f32
    %51 = vector.broadcast %cst_28 : f32 to vector<2x32xf32>
    %52 = arith.addf %51, %50 : vector<2x32xf32>
    %53 = arith.divf %51, %52 : vector<2x32xf32>
    %54 = vector.extract_strided_slice %47 {offsets = [0, 128], sizes = [2, 32], strides = [1, 1]} : vector<2x512xf32> to vector<2x32xf32>
    %55 = arith.negf %54 : vector<2x32xf32>
    %56 = math.exp %55 : vector<2x32xf32>
    %cst_29 = arith.constant 1.000000e+00 : f32
    %57 = vector.broadcast %cst_29 : f32 to vector<2x32xf32>
    %58 = arith.addf %57, %56 : vector<2x32xf32>
    %59 = arith.divf %57, %58 : vector<2x32xf32>
    %60 = vector.extract_strided_slice %47 {offsets = [0, 256], sizes = [2, 32], strides = [1, 1]} : vector<2x512xf32> to vector<2x32xf32>
    %61 = math.tanh %60 : vector<2x32xf32>
    %62 = vector.extract_strided_slice %47 {offsets = [0, 384], sizes = [2, 32], strides = [1, 1]} : vector<2x512xf32> to vector<2x32xf32>
    %63 = arith.negf %62 : vector<2x32xf32>
    %64 = math.exp %63 : vector<2x32xf32>
    %cst_30 = arith.constant 1.000000e+00 : f32
    %65 = vector.broadcast %cst_30 : f32 to vector<2x32xf32>
    %66 = arith.addf %65, %64 : vector<2x32xf32>
    %67 = arith.divf %65, %66 : vector<2x32xf32>
    %68 = arith.mulf %59, %2 : vector<2x32xf32>
    %69 = arith.mulf %53, %61 : vector<2x32xf32>
    %70 = arith.addf %68, %69 : vector<2x32xf32>
    %71 = math.tanh %70 : vector<2x32xf32>
    %72 = arith.mulf %67, %71 : vector<2x32xf32>
    %73 = tpu.concatenate %72, %41 in 1 : vector<2x32xf32>, vector<2x64xf32> -> vector<2x96xf32>
    %cst_31 = arith.constant dense<0.000000e+00> : vector<2xf32>
    %74 = vector.multi_reduction <add>, %73, %cst_31 [1] : vector<2x96xf32> to vector<2xf32>
    %75 = vector.shape_cast %74 : vector<2xf32> to vector<2x1xf32>
    %cst_32 = arith.constant 9.600000e+01 : f32
    %76 = vector.broadcast %cst_32 : f32 to vector<2x1xf32>
    %77 = arith.divf %75, %76 : vector<2x1xf32>
    %78 = vector.broadcast %77 : vector<2x1xf32> to vector<2x96xf32>
    %79 = arith.subf %73, %78 : vector<2x96xf32>
    %80 = arith.mulf %79, %79 : vector<2x96xf32>
    %cst_33 = arith.constant dense<0.000000e+00> : vector<2xf32>
    %81 = vector.multi_reduction <add>, %80, %cst_33 [1] : vector<2x96xf32> to vector<2xf32>
    %82 = vector.shape_cast %81 : vector<2xf32> to vector<2x1xf32>
    %cst_34 = arith.constant 9.600000e+01 : f32
    %83 = vector.broadcast %cst_34 : f32 to vector<2x1xf32>
    %84 = arith.divf %82, %83 : vector<2x1xf32>
    %85 = vector.broadcast %77 : vector<2x1xf32> to vector<2x96xf32>
    %86 = arith.subf %73, %85 : vector<2x96xf32>
    %cst_35 = arith.constant 9.99999974E-6 : f32
    %87 = vector.broadcast %cst_35 : f32 to vector<2x1xf32>
    %88 = arith.addf %84, %87 : vector<2x1xf32>
    %89 = math.rsqrt %88 : vector<2x1xf32>
    %90 = vector.broadcast %89 : vector<2x1xf32> to vector<2x96xf32>
    %91 = arith.mulf %86, %90 : vector<2x96xf32>
    %92 = vector.broadcast %7 : vector<1x96xf32> to vector<2x96xf32>
    %93 = arith.mulf %91, %92 : vector<2x96xf32>
    %94 = vector.broadcast %8 : vector<1x96xf32> to vector<2x96xf32>
    %95 = arith.addf %93, %94 : vector<2x96xf32>
    %96 = arith.truncf %95 : vector<2x96xf32> to vector<2x96xbf16>
    %c0_36 = arith.constant 0 : index
    %c0_37 = arith.constant 0 : index
    %97 = vector.load %arg7[%c0_36, %c0_37] : memref<96x32xbf16, #tpu.memory_space<vmem>>, vector<96x32xbf16>
    %cst_38 = arith.constant dense<0.000000e+00> : vector<2x32xf32>
    %98 = tpu.matmul %96, %97, %cst_38 {dimension_numbers = #tpu.dot_dimension_numbers<[1], [0], [0], [1], [0, 0, 1, 1], [], []>} : vector<2x96xbf16>, vector<96x32xbf16>, vector<2x32xf32> -> vector<2x32xf32>
    %99 = vector.broadcast %6 : vector<1x32xf32> to vector<2x32xf32>
    %100 = arith.addf %98, %99 : vector<2x32xf32>
    %cst_39 = arith.constant 0.000000e+00 : f32
    %101 = vector.broadcast %cst_39 : f32 to vector<2x32xf32>
    %102 = arith.maximumf %100, %101 : vector<2x32xf32>
    %103 = arith.truncf %102 : vector<2x32xf32> to vector<2x32xbf16>
    %c0_40 = arith.constant 0 : index
    %c0_41 = arith.constant 0 : index
    %104 = vector.load %arg8[%c0_40, %c0_41] : memref<32x128xbf16, #tpu.memory_space<vmem>>, vector<32x128xbf16>
    %cst_42 = arith.constant dense<0.000000e+00> : vector<2x128xf32>
    %105 = tpu.matmul %103, %104, %cst_42 {dimension_numbers = #tpu.dot_dimension_numbers<[1], [0], [0], [1], [0, 0, 1, 1], [], []>} : vector<2x32xbf16>, vector<32x128xbf16>, vector<2x128xf32> -> vector<2x128xf32>
    %106 = vector.broadcast %9 : vector<1x128xf32> to vector<2x128xf32>
    %107 = arith.addf %105, %106 : vector<2x128xf32>
    %c0_43 = arith.constant 0 : index
    %c0_44 = arith.constant 0 : index
    %108 = vector.load %arg10[%c0_43, %c0_44] : memref<2x128xf32, #tpu.memory_space<vmem>>, vector<2x128xf32>
    tpu.vector_store %arg10[%c0_43, %c0_44], %107 {strides = array<i32>} : memref<2x128xf32, #tpu.memory_space<vmem>>, vector<2x128xf32>,
    %cst_45 = arith.constant 0.000000e+00 : f32
    %109 = vector.broadcast %cst_45 : f32 to vector<2x56xf32>
    %110 = tpu.concatenate %72, %70, %37, %109 in 1 : vector<2x32xf32>, vector<2x32xf32>, vector<2x8xf32>, vector<2x56xf32> -> vector<2x128xf32>
    %c0_46 = arith.constant 0 : index
    %c0_47 = arith.constant 0 : index
    %111 = vector.load %arg11[%c0_46, %c0_47] : memref<2x128xf32, #tpu.memory_space<vmem>>, vector<2x128xf32>
    tpu.vector_store %arg11[%c0_46, %c0_47], %110 {strides = array<i32>} : memref<2x128xf32, #tpu.memory_space<vmem>>, vector<2x128xf32>,
    return
  }
}

</mosaic_0001>

<llo_original>
// kernel: tpu_custom_call.1
$region0: #{tpu_custom_call.1}
  #allocation0 [shape = 'u32[]', space=smem, size = 0x4, offset = 0x4, fixed_abs, tag = 'smem constant byte address 0x4 - core index']
  #allocation1 [shape = 'u32[72,128]{1,0:T(1,128)}', space=vmem, size = 0x9000, scoped, tag = 'internal scratch']
  %s0 = inlined_call_operand.vmem [shape: f32[2,48], index: 0, kind: input, shape index: {}]
  %s1 = inlined_call_operand.vmem [shape: f32[2,32], index: 1, kind: input, shape index: {}]
  %s2 = inlined_call_operand.vmem [shape: bf16[16,64], index: 2, kind: input, shape index: {}]
  %s3 = inlined_call_operand.vmem [shape: f32[2,8,64], index: 3, kind: input, shape index: {}]
  %s4 = inlined_call_operand.vmem [shape: bf16[32,32], index: 4, kind: input, shape index: {}]
  %s5 = inlined_call_operand.vmem [shape: bf16[64,32], index: 5, kind: input, shape index: {}]
  %s6 = inlined_call_operand.hbm [shape: bf16[112,512], index: 6, kind: input, shape index: {}]
  %s7 = inlined_call_operand.vmem [shape: bf16[96,32], index: 7, kind: input, shape index: {}]
  %s8 = inlined_call_operand.vmem [shape: bf16[32,128], index: 8, kind: input, shape index: {}]
  %s9 = inlined_call_operand.vmem [shape: f32[1,1280], index: 9, kind: input, shape index: {}]
  %s10 = inlined_call_operand.hbm [shape: f32[2,128], index: 10, kind: output, shape index: {0}]
  %s11 = inlined_call_operand.hbm [shape: f32[2,128], index: 11, kind: output, shape index: {1}]
  %12 = xla_tuple %s10, %s11
  %s13 = sld [smem:[#allocation0]]
  $region62: #{tpu_custom_call.1} parent=0
    _
  %s15 = ssub.s32 1, %s13
  %s16 = scalar_select 0, %s15, %s13
  $region1: #{tpu_custom_call.1} parent=0
    #allocation2 [shape = 'u8[114688]{0}', space=vmem, size = 0x1c000, scoped, tag = 'input window, operand 6, single buffered']
    #allocation3 [shape = 's32[1]{0}', space=sflag, size = 0x4, scoped, tag = 'scoped memory for tpu_custom_call.1']
    #allocation4 [shape = 's32[1]{0}', space=sflag, size = 0x4, scoped, tag = 'scoped memory for tpu_custom_call.1']
    #allocation5 [shape = 'u8[1024]{0}', space=vmem, size = 0x400, scoped, tag = 'output window, operand 0, single buffered']
    #allocation6 [shape = 'u8[1024]{0}', space=vmem, size = 0x400, scoped, tag = 'output window, operand 1, single buffered']
    #allocation7 [shape = 's32[1]{0}', space=sflag, size = 0x4, scoped, tag = 'scoped memory for tpu_custom_call.1']
    %17 = vsyncpa [#allocation3], 0
    %18 = vsyncpa [#allocation4], 0
    %19 = vsyncpa [#allocation7], 0
    // Predicated region
    $region2: #{tpu_custom_call.1} parent=1 // pred_check
      _
    $region3: #{tpu_custom_call.1} parent=1 // pred_check_branch
      %21 = sbr.rel (0) target = $region5
    $region4: #{tpu_custom_call.1} parent=1 // pred_region
      _
    $region5: #{tpu_custom_call.1} parent=1 // pred_fallthru
      _
    // Predicated region
    $region6: #{tpu_custom_call.1} parent=1 // pred_check
      _
    $region7: #{tpu_custom_call.1} parent=1 // pred_check_branch
      %23 = sbr.rel (0) target = $region9
    $region8: #{tpu_custom_call.1} parent=1 // pred_region
      _
    $region9: #{tpu_custom_call.1} parent=1 // pred_fallthru
      _
    // Predicated region
    $region10: #{tpu_custom_call.1} parent=1 // pred_check
      _
    $region11: #{tpu_custom_call.1} parent=1 // pred_check_branch
      %25 = sbr.rel (0) target = $region13
    $region12: #{tpu_custom_call.1} parent=1 // pred_region
      _
    $region13: #{tpu_custom_call.1} parent=1 // pred_fallthru
      _
    // Predicated region
    $region14: #{tpu_custom_call.1} parent=1 // pred_check
      _
    $region15: #{tpu_custom_call.1} parent=1 // pred_check_branch
      %27 = sbr.rel (0) target = $region17
    $region16: #{tpu_custom_call.1} parent=1 // pred_region
      _
    $region17: #{tpu_custom_call.1} parent=1 // pred_fallthru
      _
    // Predicated region
    $region18: #{tpu_custom_call.1} parent=1 // pred_check
      _
    $region19: #{tpu_custom_call.1} parent=1 // pred_check_branch
      %29 = sbr.rel (0) target = $region21
    $region20: #{tpu_custom_call.1} parent=1 // pred_region
      _
    $region21: #{tpu_custom_call.1} parent=1 // pred_fallthru
      _
    // Predicated region
    $region22: #{tpu_custom_call.1} parent=1 // pred_check
      _
    $region23: #{tpu_custom_call.1} parent=1 // pred_check_branch
      %31 = sbr.rel (0) target = $region25
    $region24: #{tpu_custom_call.1} parent=1 // pred_region
      _
    $region25: #{tpu_custom_call.1} parent=1 // pred_fallthru
      _
    // Predicated region
    $region26: #{tpu_custom_call.1} parent=1 // pred_check
      _
    $region27: #{tpu_custom_call.1} parent=1 // pred_check_branch
      %33 = sbr.rel (0) target = $region29
    $region28: #{tpu_custom_call.1} parent=1 // pred_region
      %35 = vsyncadd [#allocation3], 0
      %s36 = sshll.u32 %s6, 4
      %s37 = int_to_ptr.hbm [resolvable:$true] %s36
      %s38 = sshll.u32 [#allocation2], 4
      %s39 = int_to_ptr.vmem [resolvable:$true] %s38
      %44 = dma.hbm_to_vmem [thread:$0]  %s37, 3584, %s39, [#allocation3], 256, 256, 16
    $region29: #{tpu_custom_call.1} parent=1 // pred_fallthru
      _
    // Predicated region
    $region30: #{tpu_custom_call.1} parent=1 // pred_check
      _
    $region31: #{tpu_custom_call.1} parent=1 // pred_check_branch
      %46 = sbr.rel (0) target = $region33
    $region32: #{tpu_custom_call.1} parent=1 // pred_region
      _
    $region33: #{tpu_custom_call.1} parent=1 // pred_fallthru
      _
    // Predicated region
    $region34: #{tpu_custom_call.1} parent=1 // pred_check
      _
    $region35: #{tpu_custom_call.1} parent=1 // pred_check_branch
      %48 = sbr.rel (0) target = $region37
    $region36: #{tpu_custom_call.1} parent=1 // pred_region
      _
    $region37: #{tpu_custom_call.1} parent=1 // pred_fallthru
      _
    // Predicated region
    $region38: #{tpu_custom_call.1} parent=1 // pred_check
      _
    $region39: #{tpu_custom_call.1} parent=1 // pred_check_branch
      %50 = sbr.rel (0) target = $region41
    $region40: #{tpu_custom_call.1} parent=1 // pred_region
      _
    $region41: #{tpu_custom_call.1} parent=1 // pred_fallthru
      _
    // Predicated region
    $region42: #{tpu_custom_call.1} parent=1 // pred_check
      _
    $region43: #{tpu_custom_call.1} parent=1 // pred_check_branch
      %52 = sbr.rel (0) target = $region45
    $region44: #{tpu_custom_call.1} parent=1 // pred_region
      %54 = dma.done [#allocation3], 3584
    $region45: #{tpu_custom_call.1} parent=1 // pred_fallthru
      _
    %v56 = vld [vmem:[%s0] sm:$0x3]
    %v57 = vld [vmem:[%s1] sm:$0x3]
    %v58 = vld [vmem:[%s3] sm:$0xff]
    %v59 = vld [vmem:[%s3 + $0x8] sm:$0xff]
    %v60 = vld [vmem:[%s9] sm:$0x1]
    %v61 = vld [vmem:[%s9 + $0x1] sm:$0x1]
    %v62 = vld [vmem:[%s9 + $0x2] sm:$0x1]
    %v63 = vld [vmem:[%s9 + $0x3] sm:$0x1]
    %v64 = vld [vmem:[%s9 + $0x4] sm:$0x1]
    %v65 = vld [vmem:[%s9 + $0x5] sm:$0x1]
    %v66 = vld [vmem:[%s9 + $0x6] sm:$0xf]
    %v67 = vld [vmem:[%s2] sm:$0xf]
    %v68 = vld [vmem:[%s2 + $0x4] sm:$0xf]
    %v69 = vld [vmem:[%s5] sm:$0xf]
    %v70 = vld [vmem:[%s5 + $0x4] sm:$0xf]
    %v71 = vld [vmem:[%s5 + $0x8] sm:$0xf]
    %v72 = vld [vmem:[%s5 + $0xc] sm:$0xf]
    %v73 = vld [vmem:[%s5 + $0x10] sm:$0xf]
    %v74 = vld [vmem:[%s5 + $0x14] sm:$0xf]
    %v75 = vld [vmem:[%s5 + $0x18] sm:$0xf]
    %v76 = vld [vmem:[%s5 + $0x1c] sm:$0xf]
    %v79 = vunpack.c.l.b16 %v67
    %v80 = vunpack.c.l.b16 %v68
    %v81 = vpack.c.b16 %v80, %v79
    %v90 = vunpack.c.l.b16 %v69
    %v91 = vunpack.c.l.b16 %v70
    %v92 = vunpack.c.l.b16 %v71
    %v93 = vunpack.c.l.b16 %v72
    %v94 = vunpack.c.l.b16 %v73
    %v95 = vunpack.c.l.b16 %v74
    %v96 = vunpack.c.l.b16 %v75
    %v97 = vunpack.c.l.b16 %v76
    %v98 = vpack.c.b16 %v91, %v90
    %v99 = vpack.c.b16 %v93, %v92
    %v100 = vpack.c.b16 %v95, %v94
    %v101 = vpack.c.b16 %v97, %v96
    %vm106 = vcmask 523264
    %v108 = vsel %vm106, %v81, 0
    %110 = vmatpush.bf16.msra.mxu0 0
    %111 = vmatpush.bf16.msra.mxu0 0
    %112 = vmatpush.bf16.msra.mxu0 0
    %113 = vmatpush.bf16.msra.mxu0 0
    %114 = vmatpush.bf16.msra.mxu0 %v101
    %115 = vmatpush.bf16.msra.mxu0 %v100
    %116 = vmatpush.bf16.msra.mxu0 %v99
    %117 = vmatpush.bf16.msra.mxu0 %v98
    %118 = vmatmul.bf16.gmra.mxu0 %v108
    %v119 = vpop.f32.mrf.mxu0
    %v120 = vadd.f32 0.0, %v119
    %v121 = vpop.f32.mrf.mxu0
    %v122 = vadd.f32 0.0, %v121
    %123 = vdwg.mxu0
    %v124 = vpack.c.bf16 %v56, %v56
    %v125 = vld [vmem:[%s4] sm:$0xf]
    %v126 = vld [vmem:[%s4 + $0x4] sm:$0xf]
    %v127 = vld [vmem:[%s4 + $0x8] sm:$0xf]
    %v128 = vld [vmem:[%s4 + $0xc] sm:$0xf]
    %v130 = vperm.slane %v60, 0
    %v136 = vunpack.c.l.b16 %v125
    %v137 = vunpack.c.l.b16 %v126
    %v138 = vunpack.c.l.b16 %v127
    %v139 = vunpack.c.l.b16 %v128
    %v140 = vpack.c.b16 %v137, %v136
    %v141 = vpack.c.b16 %v139, %v138
    %vm144 = vcmask 261120
    %v146 = vsel %vm144, %v124, 0
    %148 = vmatpush.bf16.msra.mxu0 0
    %149 = vmatpush.bf16.msra.mxu0 0
    %150 = vmatpush.bf16.msra.mxu0 0
    %151 = vmatpush.bf16.msra.mxu0 0
    %152 = vmatpush.bf16.msra.mxu0 0
    %153 = vmatpush.bf16.msra.mxu0 0
    %154 = vmatpush.bf16.msra.mxu0 %v141
    %155 = vmatpush.bf16.msra.mxu0 %v140
    %156 = vmatmul.bf16.gmra.mxu0 %v146
    %v157 = vpop.f32.mrf.mxu0
    %v158 = vadd.f32 %v130, %v157
    %v159 = vpop.f32.mrf.mxu0
    %160 = vdwg.mxu0
    %v162 = vrot.slane %v158, 1
    %v163 = vperm.slane %v158, 0
    %v164 = vperm.slane %v162, 0
    %v167 = vadd.f32 %v120, %v163
    %v168 = vadd.f32 %v122, %v164
    %v169 = vtanh.pop %v167
    %v170 = vtanh.pop %v168
    %v172 = vperm.slane %v61, 0
    %v174 = vmul.f32 %v169, %v172
    %v175 = vmul.f32 %v170, %v172
    %v176 = vsel %vm144, %v174, 0.0
    %177 = vadd.xlane.f32.xlu0 %v176
    %v178 = vpop.xlane.xlu0 %177
    %v179 = vsel %vm144, %v175, 0.0
    %180 = vadd.xlane.f32.xlu0 %v179
    %v181 = vpop.xlane.xlu0 %180
    %v184 = vlaneseq
    %v185 = vand.u32 %v184, 127
    %v186 = vperm.slane %v178, %v185
    %v187 = vperm.slane %v181, %v185
    %vm188 = vcmask 1041409
    %v189 = vsel %vm188, %v187, %v186
    %vm191 = vcmask 58368
    %v192 = vsel %vm191, %v189, -inf
    %193 = vmax.xlane.f32.xlu0 %v192
    %v194 = vpop.xlane.xlu0 %193
    %v196 = vperm.slane %v194, 0
    %v197 = vperm.slane %v194, 1
    %v200 = vsub.f32 %v178, %v196
    %v201 = vsub.f32 %v181, %v197
    %v202 = vmul.f32 %v200, 1.442695
    %v203 = vpow.pop %v202
    %v204 = vmul.f32 %v201, 1.442695
    %v205 = vpow.pop %v204
    %208 = vset.pattern.permute.xlu0 0
    %209 = vperm.xlu0 %208, %v203
    %v210 = vpop.permute.xlu0 %209
    %211 = vset.pattern.permute.xlu0 0
    %212 = vperm.xlu0 %211, %v205
    %v213 = vpop.permute.xlu0 %212
    %v214 = vperm.slane %v210, %v185
    %v215 = vperm.slane %v213, %v185
    %v216 = vsel %vm188, %v215, %v214
    %v218 = vsel %vm191, %v216, 0.0
    %219 = vadd.xlane.f32.xlu0 %v218
    %v220 = vpop.xlane.xlu0 %219
    %v221 = vrcp.pop %v220
    %v223 = vperm.slane %v221, 0
    %v224 = vperm.slane %v221, 1
    %v227 = vmul.f32 %v203, %v223
    %v228 = vmul.f32 %v205, %v224
    %230 = vset.pattern.permute.xlu0 0
    %231 = vperm.xlu0 %230, %v227
    %v232 = vpop.permute.xlu0 %231
    %235 = vset.pattern.permute.xlu0 0
    %236 = vperm.xlu0 %235, %v228
    %v237 = vpop.permute.xlu0 %236
    %v239 = vmul.f32 %v232, %v58
    %v240 = vmul.f32 %v237, %v59
    %v241 = vsel %vm106, %v239, 0.0
    %v242 = vrot.slane %v241, 4
    %v243 = vadd.f32 %v241, %v242
    %v244 = vrot.slane %v243, 2
    %v245 = vadd.f32 %v243, %v244
    %v246 = vrot.slane %v245, 1
    %v247 = vadd.f32 %v245, %v246
    %v248 = vsel %vm106, %v240, 0.0
    %v249 = vrot.slane %v248, 4
    %v250 = vadd.f32 %v248, %v249
    %v251 = vrot.slane %v250, 2
    %v252 = vadd.f32 %v250, %v251
    %v253 = vrot.slane %v252, 1
    %v254 = vadd.f32 %v252, %v253
    %v257 = vsel %vm188, %v254, %v247
    %258 = vrot.lane.b32.xlu0 %v257, 48
    %v259 = vpop.permute.xlu0 %258
    %vm261 = vcmask 392192
    %v262 = vsel %vm261, %v56, %v259
    %v263 = vpack.c.bf16 %v262, %v262
    %v264 = vld [vmem:[#allocation2] sm:$0xff]
    %v265 = vld [vmem:[#allocation2 + $0x8] sm:$0xff]
    %v266 = vld [vmem:[#allocation2 + $0x10] sm:$0xff]
    %v267 = vld [vmem:[#allocation2 + $0x18] sm:$0xff]
    %v268 = vld [vmem:[#allocation2 + $0x20] sm:$0xff]
    %v269 = vld [vmem:[#allocation2 + $0x28] sm:$0xff]
    %v270 = vld [vmem:[#allocation2 + $0x30] sm:$0xff]
    %v271 = vld [vmem:[#allocation2 + $0x38] sm:$0xff]
    %v272 = vld [vmem:[#allocation2 + $0x40] sm:$0xff]
    %v273 = vld [vmem:[#allocation2 + $0x48] sm:$0xff]
    %v274 = vld [vmem:[#allocation2 + $0x50] sm:$0xff]
    %v275 = vld [vmem:[#allocation2 + $0x58] sm:$0xff]
    %v276 = vld [vmem:[#allocation2 + $0x60] sm:$0xff]
    %v277 = vld [vmem:[#allocation2 + $0x68] sm:$0xff]
    %v278 = vld [vmem:[#allocation2 + $0x70] sm:$0xff]
    %v279 = vld [vmem:[#allocation2 + $0x78] sm:$0xff]
    %v280 = vld [vmem:[#allocation2 + $0x80] sm:$0xff]
    %v281 = vld [vmem:[#allocation2 + $0x88] sm:$0xff]
    %v282 = vld [vmem:[#allocation2 + $0x90] sm:$0xff]
    %v283 = vld [vmem:[#allocation2 + $0x98] sm:$0xff]
    %v284 = vld [vmem:[#allocation2 + $0xa0] sm:$0xff]
    %v285 = vld [vmem:[#allocation2 + $0xa8] sm:$0xff]
    %v286 = vld [vmem:[#allocation2 + $0xb0] sm:$0xff]
    %v287 = vld [vmem:[#allocation2 + $0xb8] sm:$0xff]
    %v288 = vld [vmem:[#allocation2 + $0xc0] sm:$0xff]
    %v289 = vld [vmem:[#allocation2 + $0xc8] sm:$0xff]
    %v290 = vld [vmem:[#allocation2 + $0xd0] sm:$0xff]
    %v291 = vld [vmem:[#allocation2 + $0xd8] sm:$0xff]
    %v293 = vperm.slane %v66, 0
    %v294 = vperm.slane %v66, 1
    %v295 = vperm.slane %v66, 2
    %v296 = vperm.slane %v66, 3
    %v329 = vunpack.c.l.b16 %v264
    %v330 = vunpack.c.h.b16 %v264
    %v331 = vunpack.c.l.b16 %v265
    %v332 = vunpack.c.h.b16 %v265
    %v333 = vunpack.c.l.b16 %v266
    %v334 = vunpack.c.h.b16 %v266
    %v335 = vunpack.c.l.b16 %v267
    %v336 = vunpack.c.h.b16 %v267
    %v337 = vunpack.c.l.b16 %v268
    %v338 = vunpack.c.h.b16 %v268
    %v339 = vunpack.c.l.b16 %v269
    %v340 = vunpack.c.h.b16 %v269
    %v341 = vunpack.c.l.b16 %v270
    %v342 = vunpack.c.h.b16 %v270
    %v343 = vunpack.c.l.b16 %v271
    %v344 = vunpack.c.h.b16 %v271
    %v345 = vunpack.c.l.b16 %v272
    %v346 = vunpack.c.h.b16 %v272
    %v347 = vunpack.c.l.b16 %v273
    %v348 = vunpack.c.h.b16 %v273
    %v349 = vunpack.c.l.b16 %v274
    %v350 = vunpack.c.h.b16 %v274
    %v351 = vunpack.c.l.b16 %v275
    %v352 = vunpack.c.h.b16 %v275
    %v353 = vunpack.c.l.b16 %v276
    %v354 = vunpack.c.h.b16 %v276
    %v355 = vunpack.c.l.b16 %v277
    %v356 = vunpack.c.h.b16 %v277
    %v357 = vunpack.c.l.b16 %v278
    %v358 = vunpack.c.h.b16 %v278
    %v359 = vunpack.c.l.b16 %v279
    %v360 = vunpack.c.h.b16 %v279
    %v361 = vunpack.c.l.b16 %v280
    %v362 = vunpack.c.h.b16 %v280
    %v363 = vunpack.c.l.b16 %v281
    %v364 = vunpack.c.h.b16 %v281
    %v365 = vunpack.c.l.b16 %v282
    %v366 = vunpack.c.h.b16 %v282
    %v367 = vunpack.c.l.b16 %v283
    %v368 = vunpack.c.h.b16 %v283
    %v369 = vunpack.c.l.b16 %v284
    %v370 = vunpack.c.h.b16 %v284
    %v371 = vunpack.c.l.b16 %v285
    %v372 = vunpack.c.h.b16 %v285
    %v373 = vunpack.c.l.b16 %v286
    %v374 = vunpack.c.h.b16 %v286
    %v375 = vunpack.c.l.b16 %v287
    %v376 = vunpack.c.h.b16 %v287
    %v377 = vunpack.c.l.b16 %v288
    %v378 = vunpack.c.h.b16 %v288
    %v379 = vunpack.c.l.b16 %v289
    %v380 = vunpack.c.h.b16 %v289
    %v381 = vunpack.c.l.b16 %v290
    %v382 = vunpack.c.h.b16 %v290
    %v383 = vunpack.c.l.b16 %v291
    %v384 = vunpack.c.h.b16 %v291
    %v385 = vpack.c.b16 %v333, %v329
    %v386 = vpack.c.b16 %v334, %v330
    %v387 = vpack.c.b16 %v335, %v331
    %v388 = vpack.c.b16 %v336, %v332
    %v389 = vpack.c.b16 %v341, %v337
    %v390 = vpack.c.b16 %v342, %v338
    %v391 = vpack.c.b16 %v343, %v339
    %v392 = vpack.c.b16 %v344, %v340
    %v393 = vpack.c.b16 %v349, %v345
    %v394 = vpack.c.b16 %v350, %v346
    %v395 = vpack.c.b16 %v351, %v347
    %v396 = vpack.c.b16 %v352, %v348
    %v397 = vpack.c.b16 %v357, %v353
    %v398 = vpack.c.b16 %v358, %v354
    %v399 = vpack.c.b16 %v359, %v355
    %v400 = vpack.c.b16 %v360, %v356
    %v401 = vpack.c.b16 %v365, %v361
    %v402 = vpack.c.b16 %v366, %v362
    %v403 = vpack.c.b16 %v367, %v363
    %v404 = vpack.c.b16 %v368, %v364
    %v405 = vpack.c.b16 %v373, %v369
    %v406 = vpack.c.b16 %v374, %v370
    %v407 = vpack.c.b16 %v375, %v371
    %v408 = vpack.c.b16 %v376, %v372
    %v409 = vpack.c.b16 %v381, %v377
    %v410 = vpack.c.b16 %v382, %v378
    %v411 = vpack.c.b16 %v383, %v379
    %v412 = vpack.c.b16 %v384, %v380
    %vm441 = vcmask 916480
    %v443 = vsel %vm441, %v263, 0
    %445 = vmatpush.bf16.msra.mxu0 0
    %446 = vmatpush.bf16.msra.mxu0 %v409
    %447 = vmatpush.bf16.msra.mxu0 %v405
    %448 = vmatpush.bf16.msra.mxu0 %v401
    %449 = vmatpush.bf16.msra.mxu0 %v397
    %450 = vmatpush.bf16.msra.mxu0 %v393
    %451 = vmatpush.bf16.msra.mxu0 %v389
    %452 = vmatpush.bf16.msra.mxu0 %v385
    %453 = vmatmul.bf16.gmra.mxu0 %v443
    %v454 = vpop.f32.mrf.mxu0
    %v455 = vadd.f32 %v293, %v454
    %v456 = vpop.f32.mrf.mxu0
    %457 = vdwg.mxu0
    %458 = vmatpush.bf16.msra.mxu0 0
    %459 = vmatpush.bf16.msra.mxu0 %v410
    %460 = vmatpush.bf16.msra.mxu0 %v406
    %461 = vmatpush.bf16.msra.mxu0 %v402
    %462 = vmatpush.bf16.msra.mxu0 %v398
    %463 = vmatpush.bf16.msra.mxu0 %v394
    %464 = vmatpush.bf16.msra.mxu0 %v390
    %465 = vmatpush.bf16.msra.mxu0 %v386
    %466 = vmatmul.bf16.gmra.mxu0 %v443
    %v467 = vpop.f32.mrf.mxu0
    %v468 = vadd.f32 %v294, %v467
    %v469 = vpop.f32.mrf.mxu0
    %470 = vdwg.mxu0
    %471 = vmatpush.bf16.msra.mxu0 0
    %472 = vmatpush.bf16.msra.mxu0 %v411
    %473 = vmatpush.bf16.msra.mxu0 %v407
    %474 = vmatpush.bf16.msra.mxu0 %v403
    %475 = vmatpush.bf16.msra.mxu0 %v399
    %476 = vmatpush.bf16.msra.mxu0 %v395
    %477 = vmatpush.bf16.msra.mxu0 %v391
    %478 = vmatpush.bf16.msra.mxu0 %v387
    %479 = vmatmul.bf16.gmra.mxu0 %v443
    %v480 = vpop.f32.mrf.mxu0
    %v481 = vadd.f32 %v295, %v480
    %v482 = vpop.f32.mrf.mxu0
    %483 = vdwg.mxu0
    %484 = vmatpush.bf16.msra.mxu0 0
    %485 = vmatpush.bf16.msra.mxu0 %v412
    %486 = vmatpush.bf16.msra.mxu0 %v408
    %487 = vmatpush.bf16.msra.mxu0 %v404
    %488 = vmatpush.bf16.msra.mxu0 %v400
    %489 = vmatpush.bf16.msra.mxu0 %v396
    %490 = vmatpush.bf16.msra.mxu0 %v392
    %491 = vmatpush.bf16.msra.mxu0 %v388
    %492 = vmatmul.bf16.gmra.mxu0 %v443
    %v493 = vpop.f32.mrf.mxu0
    %v494 = vadd.f32 %v296, %v493
    %v495 = vpop.f32.mrf.mxu0
    %496 = vdwg.mxu0
    %v497 = vxor.u32 %v455, 2147483648
    %v498 = vmul.f32 %v497, 1.442695
    %v499 = vpow.pop %v498
    %v500 = vadd.f32 %v499, 1.0
    %v501 = vrcp.pop %v500
    %v502 = vmul.f32 %v500, %v501
    %v503 = vsub.f32 1.0, %v502
    %v504 = vmul.f32 %v501, %v503
    %v505 = vadd.f32 %v501, %v504
    %vm506 = vweird.f32 %v500
    %vm507 = vweird.f32 %v501
    %vm508 = vmor %vm506, %vm507
    %v509 = vsel %vm508, %v501, %v505
    %v510 = vand.u32 2147483647, %v500
    %vm511 = vcmp.eq.f32.partialorder %v510, 8.507059e+37
    %v512 = vand.u32 %v500, 2147483648
    %v513 = vor.u32 1.1754944e-38, %v512
    %v514 = vsel %vm511, %v513, %v509
    %v515 = vmul.f32 1.0, %v514
    %v516 = vxor.u32 %v468, 2147483648
    %v517 = vmul.f32 %v516, 1.442695
    %v518 = vpow.pop %v517
    %v519 = vadd.f32 %v518, 1.0
    %v520 = vrcp.pop %v519
    %v521 = vmul.f32 %v519, %v520
    %v522 = vsub.f32 1.0, %v521
    %v523 = vmul.f32 %v520, %v522
    %v524 = vadd.f32 %v520, %v523
    %vm525 = vweird.f32 %v519
    %vm526 = vweird.f32 %v520
    %vm527 = vmor %vm525, %vm526
    %v528 = vsel %vm527, %v520, %v524
    %v529 = vand.u32 2147483647, %v519
    %vm530 = vcmp.eq.f32.partialorder %v529, 8.507059e+37
    %v531 = vand.u32 %v519, 2147483648
    %v532 = vor.u32 1.1754944e-38, %v531
    %v533 = vsel %vm530, %v532, %v528
    %v534 = vmul.f32 1.0, %v533
    %v535 = vtanh.pop %v481
    %v536 = vxor.u32 %v494, 2147483648
    %v537 = vmul.f32 %v536, 1.442695
    %v538 = vpow.pop %v537
    %v539 = vadd.f32 %v538, 1.0
    %v540 = vrcp.pop %v539
    %v541 = vmul.f32 %v539, %v540
    %v542 = vsub.f32 1.0, %v541
    %v543 = vmul.f32 %v540, %v542
    %v544 = vadd.f32 %v540, %v543
    %vm545 = vweird.f32 %v539
    %vm546 = vweird.f32 %v540
    %vm547 = vmor %vm545, %vm546
    %v548 = vsel %vm547, %v540, %v544
    %v549 = vand.u32 2147483647, %v539
    %vm550 = vcmp.eq.f32.partialorder %v549, 8.507059e+37
    %v551 = vand.u32 %v539, 2147483648
    %v552 = vor.u32 1.1754944e-38, %v551
    %v553 = vsel %vm550, %v552, %v548
    %v554 = vmul.f32 1.0, %v553
    %v555 = vmul.f32 %v534, %v57
    %v556 = vmul.f32 %v515, %v535
    %v557 = vadd.f32 %v555, %v556
    %v558 = vtanh.pop %v557
    %v559 = vmul.f32 %v554, %v558
    %560 = vrot.lane.b32.xlu0 %v257, 32
    %v561 = vpop.permute.xlu0 %560
    %v563 = vsel %vm144, %v559, %v561
    %vm564 = vcmask 779264
    %v565 = vsel %vm564, %v563, 0.0
    %566 = vadd.xlane.f32.xlu0 %v565
    %v567 = vpop.xlane.xlu0 %566
    %v568 = vrcp.pop 96.0
    %v569 = vmul.f32 96.0, %v568
    %v570 = vsub.f32 1.0, %v569
    %v571 = vmul.f32 %v568, %v570
    %v572 = vadd.f32 %v568, %v571
    %vm573 = vweird.f32 %v568
    %v574 = vsel %vm573, %v568, %v572
    %v575 = vmul.f32 %v567, %v574
    %v576 = vsub.f32 %v563, %v575
    %v577 = vmul.f32 %v576, %v576
    %v578 = vsel %vm564, %v577, 0.0
    %579 = vadd.xlane.f32.xlu0 %v578
    %v580 = vpop.xlane.xlu0 %579
    %v581 = vmul.f32 %v580, %v574
    %v582 = vadd.f32 %v581, 1e-05
    %v583 = vrsqrt.pop %v582
    %v584 = vmul.f32 %v583, %v582
    %v585 = vmul.f32 %v584, %v583
    %v586 = vmul.f32 0.5, %v585
    %v587 = vsub.f32 1.5, %v586
    %v588 = vmul.f32 %v583, %v587
    %vm589 = vweird.f32 %v582
    %vm590 = vweird.f32 %v583
    %vm591 = vmor %vm589, %vm590
    %v592 = vsel %vm591, %v583, %v588
    %v593 = vmul.f32 %v576, %v592
    %v595 = vperm.slane %v63, 0
    %v597 = vmul.f32 %v593, %v595
    %v599 = vperm.slane %v64, 0
    %v601 = vadd.f32 %v597, %v599
    %v602 = vpack.c.bf16 %v601, %v601
    %v603 = vld [vmem:[%s7] sm:$0xf]
    %v604 = vld [vmem:[%s7 + $0x4] sm:$0xf]
    %v605 = vld [vmem:[%s7 + $0x8] sm:$0xf]
    %v606 = vld [vmem:[%s7 + $0xc] sm:$0xf]
    %v607 = vld [vmem:[%s7 + $0x10] sm:$0xf]
    %v608 = vld [vmem:[%s7 + $0x14] sm:$0xf]
    %v609 = vld [vmem:[%s7 + $0x18] sm:$0xf]
    %v610 = vld [vmem:[%s7 + $0x1c] sm:$0xf]
    %v611 = vld [vmem:[%s7 + $0x20] sm:$0xf]
    %v612 = vld [vmem:[%s7 + $0x24] sm:$0xf]
    %v613 = vld [vmem:[%s7 + $0x28] sm:$0xf]
    %v614 = vld [vmem:[%s7 + $0x2c] sm:$0xf]
    %v616 = vperm.slane %v62, 0
    %v630 = vunpack.c.l.b16 %v603
    %v631 = vunpack.c.l.b16 %v604
    %v632 = vunpack.c.l.b16 %v605
    %v633 = vunpack.c.l.b16 %v606
    %v634 = vunpack.c.l.b16 %v607
    %v635 = vunpack.c.l.b16 %v608
    %v636 = vunpack.c.l.b16 %v609
    %v637 = vunpack.c.l.b16 %v610
    %v638 = vunpack.c.l.b16 %v611
    %v639 = vunpack.c.l.b16 %v612
    %v640 = vunpack.c.l.b16 %v613
    %v641 = vunpack.c.l.b16 %v614
    %v642 = vpack.c.b16 %v631, %v630
    %v643 = vpack.c.b16 %v633, %v632
    %v644 = vpack.c.b16 %v635, %v634
    %v645 = vpack.c.b16 %v637, %v636
    %v646 = vpack.c.b16 %v639, %v638
    %v647 = vpack.c.b16 %v641, %v640
    %vm654 = vcmask 785408
    %v656 = vsel %vm654, %v602, 0
    %658 = vmatpush.bf16.msra.mxu0 0
    %659 = vmatpush.bf16.msra.mxu0 0
    %660 = vmatpush.bf16.msra.mxu0 %v647
    %661 = vmatpush.bf16.msra.mxu0 %v646
    %662 = vmatpush.bf16.msra.mxu0 %v645
    %663 = vmatpush.bf16.msra.mxu0 %v644
    %664 = vmatpush.bf16.msra.mxu0 %v643
    %665 = vmatpush.bf16.msra.mxu0 %v642
    %666 = vmatmul.bf16.gmra.mxu0 %v656
    %v667 = vpop.f32.mrf.mxu0
    %v668 = vadd.f32 %v616, %v667
    %v669 = vpop.f32.mrf.mxu0
    %670 = vdwg.mxu0
    %v671 = vmax.f32 %v668, 0.0
    %v672 = vpack.c.bf16 %v671, %v671
    %v673 = vld [vmem:[%s8] sm:$0xf]
    %v674 = vld [vmem:[%s8 + $0x4] sm:$0xf]
    %v675 = vld [vmem:[%s8 + $0x8] sm:$0xf]
    %v676 = vld [vmem:[%s8 + $0xc] sm:$0xf]
    %v678 = vperm.slane %v65, 0
    %v684 = vunpack.c.l.b16 %v673
    %v685 = vunpack.c.l.b16 %v674
    %v686 = vunpack.c.l.b16 %v675
    %v687 = vunpack.c.l.b16 %v676
    %v688 = vpack.c.b16 %v685, %v684
    %v689 = vpack.c.b16 %v687, %v686
    %v693 = vsel %vm144, %v672, 0
    %695 = vmatpush.bf16.msra.mxu0 0
    %696 = vmatpush.bf16.msra.mxu0 0
    %697 = vmatpush.bf16.msra.mxu0 0
    %698 = vmatpush.bf16.msra.mxu0 0
    %699 = vmatpush.bf16.msra.mxu0 0
    %700 = vmatpush.bf16.msra.mxu0 0
    %701 = vmatpush.bf16.msra.mxu0 %v689
    %702 = vmatpush.bf16.msra.mxu0 %v688
    %703 = vmatmul.bf16.gmra.mxu0 %v693
    %v704 = vpop.f32.mrf.mxu0
    %v705 = vadd.f32 %v678, %v704
    %v706 = vpop.f32.mrf.mxu0
    %707 = vdwg.mxu0
    %708 = vst [vmem:[#allocation5] sm:$0x3] %v705
    %710 = vrot.lane.b32.xlu0 %v557, 32
    %v711 = vpop.permute.xlu0 %710
    %v713 = vadd.s32 %v185, 4294967232
    %v714 = vperm.slane %v232, %v713
    %v715 = vperm.slane %v237, %v713
    %v716 = vsel %vm188, %v715, %v714
    %v718 = vsel %vm144, %v559, %v711
    %v719 = vsel %vm106, %v718, %v716
    %vm720 = vcmask 588800
    %v721 = vsel %vm720, %v719, 0.0
    %722 = vst [vmem:[#allocation6] sm:$0x3] %v721
    // Predicated region
    $region46: #{tpu_custom_call.1} parent=1 // pred_check
      _
    $region47: #{tpu_custom_call.1} parent=1 // pred_check_branch
      %724 = sbr.rel (0) target = $region49
    $region48: #{tpu_custom_call.1} parent=1 // pred_region
      %726 = vsyncadd [#allocation4], 0
      %s728 = sshll.u32 [#allocation5], 4
      %s729 = int_to_ptr.vmem [resolvable:$true] %s728
      %s730 = sshll.u32 %s10, 4
      %s731 = int_to_ptr.hbm [resolvable:$true] %s730
      %733 = dma.vmem_to_hbm [thread:$0]  %s729, 32, %s731, [#allocation4]
    $region49: #{tpu_custom_call.1} parent=1 // pred_fallthru
      _
    // Predicated region
    $region50: #{tpu_custom_call.1} parent=1 // pred_check
      _
    $region51: #{tpu_custom_call.1} parent=1 // pred_check_branch
      %735 = sbr.rel (0) target = $region53
    $region52: #{tpu_custom_call.1} parent=1 // pred_region
      %737 = vsyncadd [#allocation7], 0
      %s739 = sshll.u32 [#allocation6], 4
      %s740 = int_to_ptr.vmem [resolvable:$true] %s739
      %s741 = sshll.u32 %s11, 4
      %s742 = int_to_ptr.hbm [resolvable:$true] %s741
      %744 = dma.vmem_to_hbm [thread:$0]  %s740, 32, %s742, [#allocation7]
    $region53: #{tpu_custom_call.1} parent=1 // pred_fallthru
      _
    // Predicated region
    $region54: #{tpu_custom_call.1} parent=1 // pred_check
      _
    $region55: #{tpu_custom_call.1} parent=1 // pred_check_branch
      %746 = sbr.rel (0) target = $region57
    $region56: #{tpu_custom_call.1} parent=1 // pred_region
      %748 = dma.done [#allocation4], 32
    $region57: #{tpu_custom_call.1} parent=1 // pred_fallthru
      _
    // Predicated region
    $region58: #{tpu_custom_call.1} parent=1 // pred_check
      _
    $region59: #{tpu_custom_call.1} parent=1 // pred_check_branch
      %750 = sbr.rel (0) target = $region61
    $region60: #{tpu_custom_call.1} parent=1 // pred_region
      %752 = dma.done [#allocation7], 32
    $region61: #{tpu_custom_call.1} parent=1 // pred_fallthru
      _
    %753 = vsyncpa [#allocation3], 1
    %754 = vsyncpa [#allocation4], 1
    %755 = vsyncpa [#allocation7], 1

</llo_original>
